<compile_context>
chip_gen: v7x
topology: tpu7x:2x2x1
jax: 0.10.0
libtpu: 0.0.40
codegen_flags: <defaults>
</compile_context>

<pallas_src>
import functools

import jax
import jax.numpy as jnp
from jax.experimental import pallas as pl
from jax.experimental.pallas import tpu as pltpu


def _conv_bn_act_kernel(x_ref, w_ref, b_ref, o_ref, patch_ref, *,
                        cin_pad, kh, kw, h, w, b_tile, out_cols):
    # x_ref:     (b_tile, cin_pad, H*W)        batch tile, spatial flat on lanes
    # w_ref:     (C_out, kh*kw*cin_pad)        im2col weights, BN scale pre-folded
    # b_ref:     (C_out, 1)                    folded BN bias (lane broadcast)
    # o_ref:     (b_tile, C_out, out_h*W)      lane-dense output slab
    # patch_ref: (kh*kw*cin_pad, b_tile*H*W)   VMEM scratch: im2col operand
    hw = h * w

    # ---- im2col staging: one XLU roll + one aligned full-width store per slab --
    # Needed: patch[tap, j] = x[j + s] for valid output pixels (never wraps there);
    # the wrapped tail only lands in columns the wrapper discards.
    for dh in range(kh):
        for dw in range(kw):
            s = dh * w + dw                         # flat lane shift of this tap
            r0 = (dh * kw + dw) * cin_pad           # 8-aligned sublane row offset
            for b in range(b_tile):
                slab = x_ref[b]                     # (cin_pad, hw)
                if s:
                    # left-shift by s == np.roll by (hw - s); runs on the XLU slot
                    slab = pltpu.roll(slab, hw - s, axis=1)
                patch_ref[r0:r0 + cin_pad, b * hw:(b + 1) * hw] = (
                    slab.astype(patch_ref.dtype))

    # ---- one MXU matmul, contraction K = kh*kw*cin_pad, N = b_tile*H*W ---------
    acc = jnp.dot(w_ref[...], patch_ref[...],
                  preferred_element_type=jnp.float32)   # (C_out, b_tile*hw), f32

    # ---- bias + ReLU epilogue (scale already folded into weights) --------------
    y = jnp.maximum(acc + b_ref[...], 0.0)
    for b in range(b_tile):
        # store only the first out_h rows' worth of flat columns (lane-dense,
        # trims writeback + the wrapper slice input)
        o_ref[b] = y[:, b * hw: b * hw + out_cols].astype(o_ref.dtype)


def conv_bn_act(x_nchw, w_oihw, gamma, beta, running_mean, running_var,
                eps=1e-5, compute_dtype=jnp.float32):
    """relu(batchnorm(conv2d(x)))  — Conv2d(k, s=1, p=0, d=1, bias=False), NCHW."""
    n, cin, h, w = x_nchw.shape
    cout, cin2, kh, kw = w_oihw.shape
    assert cin2 == cin
    out_h, out_w = h - kh + 1, w - kw + 1          # p=0, s=1, d=1 ("valid" conv)
    hw = h * w
    out_cols = out_h * w                           # flat columns actually stored

    cin_pad = max(8, ((cin + 7) // 8) * 8)         # sublane-align each tap's rows
    b_tile = 1                                     # batch elements per grid step
    for cand in (8, 4, 2, 1):
        if n % cand == 0:
            b_tile = cand
            break

    # Fold BatchNorm (inference) into per-channel scale / bias, then fold the
    # scale into the weight matrix (exact in f32).
    scale = (gamma / jnp.sqrt(running_var + eps)).astype(jnp.float32)
    bias = (beta - running_mean * scale).astype(jnp.float32)

    # Weight as (C_out, kh*kw*cin_pad); column = (dh*kw+dw)*cin_pad + c, matching
    # the im2col row order built inside the kernel.  Pad channels are zero.
    wmat = jnp.transpose(w_oihw, (0, 2, 3, 1))                     # (cout,kh,kw,cin)
    wmat = jnp.pad(wmat, ((0, 0), (0, 0), (0, 0), (0, cin_pad - cin)))
    wmat = wmat.reshape(cout, kh * kw * cin_pad)
    wmat = (wmat * scale[:, None]).astype(compute_dtype)

    # NCHW -> (N, cin_pad, H*W): free reshape + tiny zero channel-pad (no-op when
    # cin is already a multiple of 8).
    x_flat = x_nchw.reshape(n, cin, hw)
    if cin_pad != cin:
        x_flat = jnp.pad(x_flat, ((0, 0), (0, cin_pad - cin), (0, 0)))

    kernel = functools.partial(
        _conv_bn_act_kernel, cin_pad=cin_pad, kh=kh, kw=kw, h=h, w=w,
        b_tile=b_tile, out_cols=out_cols)

    out_flat = pl.pallas_call(
        kernel,
        out_shape=jax.ShapeDtypeStruct((n, cout, out_cols), x_nchw.dtype),
        grid_spec=pltpu.PrefetchScalarGridSpec(
            num_scalar_prefetch=0,
            grid=(n // b_tile,),                                  # batch-tile axis
            in_specs=[
                pl.BlockSpec((b_tile, cin_pad, hw), lambda i: (i, 0, 0)),
                pl.BlockSpec((cout, kh * kw * cin_pad), lambda i: (0, 0)),
                pl.BlockSpec((cout, 1), lambda i: (0, 0)),
            ],
            out_specs=pl.BlockSpec((b_tile, cout, out_cols), lambda i: (i, 0, 0)),
            scratch_shapes=[
                pltpu.VMEM((kh * kw * cin_pad, b_tile * hw), compute_dtype)],
        ),
        compiler_params=pltpu.CompilerParams(
            dimension_semantics=("parallel",)),                   # 2 TCs on v7x
    )(x_flat, wmat, bias.reshape(cout, 1))

    # Valid-conv region: flat j = ho*W + wo; ho < out_h already enforced by the
    # kernel's trimmed store, only the wo >= out_w columns remain to drop here.
    return out_flat.reshape(n, cout, out_h, w)[:, :, :, :out_w]


def _reference(x, w, gamma, beta, mean, var, eps=1e-5):
    """Pure-JAX reference (PyTorch module in eval mode)."""
    y = jax.lax.conv_general_dilated(
        x, w, window_strides=(1, 1), padding='VALID',
        dimension_numbers=('NCHW', 'OIHW', 'NCHW'))
    scale = gamma / jnp.sqrt(var + eps)
    bias = beta - mean * scale
    y = y * scale[None, :, None, None] + bias[None, :, None, None]
    return jnp.maximum(y, 0.0)


if __name__ == "__main__":
    # ConvBnAct defaults: in_ch=3, out_ch=64, k=3, s=1, p=0, bias=False.
    N, C_IN, C_OUT, H, W, K = 2, 3, 64, 16, 16, 3
    key = jax.random.PRNGKey(0)
    ks = jax.random.split(key, 6)

    x = jax.random.normal(ks[0], (N, C_IN, H, W), jnp.float32)
    wgt = jax.random.normal(ks[1], (C_OUT, C_IN, K, K), jnp.float32) * 0.1

    gamma = 1.0 + 0.1 * jax.random.normal(ks[2], (C_OUT,), jnp.float32)
    beta = 0.1 * jax.random.normal(ks[3], (C_OUT,), jnp.float32)
    running_mean = 0.1 * jax.random.normal(ks[4], (C_OUT,), jnp.float32)
    running_var = jax.random.uniform(ks[5], (C_OUT,), jnp.float32, 0.5, 1.5)

    out = conv_bn_act(x, wgt, gamma, beta, running_mean, running_var)
    out = jax.block_until_ready(out)

    ref = _reference(x, wgt, gamma, beta, running_mean, running_var)
    assert out.shape == (N, C_OUT, H - K + 1, W - K + 1)
    assert jnp.allclose(out, ref, atol=1e-4, rtol=1e-4), "mismatch vs reference"

    print("KERNEL_OK")
</pallas_src>

<mosaic_0001>
module attributes {stable_mosaic.version = 11 : i64} {
  func.func @_conv_bn_act_kernel(%arg0: i32, %arg1: memref<2x8x256xf32, #tpu.memory_space<vmem>>, %arg2: memref<64x72xf32, #tpu.memory_space<vmem>>, %arg3: memref<64x1xf32, #tpu.memory_space<vmem>>, %arg4: memref<2x64x224xf32, #tpu.memory_space<vmem>>, %arg5: memref<72x512xf32, #tpu.memory_space<vmem>>) attributes {dimension_semantics = [#tpu.dimension_semantics<parallel>], iteration_bounds = array<i64: 1>, scalar_prefetch = 0 : i64, scratch_operands = 1 : i64, tpu.core_type = #tpu.core_type<tc>, window_params = [{transform_indices = @transform_0, window_bounds = array<i64: 2, 8, 256>}, {pipeline_mode = #tpu.pipeline_mode<synchronous>, transform_indices = @transform_1, window_bounds = array<i64: 64, 72>}, {pipeline_mode = #tpu.pipeline_mode<synchronous>, transform_indices = @transform_2, window_bounds = array<i64: 64, 1>}, {transform_indices = @transform_3, window_bounds = array<i64: 2, 64, 224>}]} {
    %c0 = arith.constant 0 : index
    %c0_0 = arith.constant 0 : index
    %c0_1 = arith.constant 0 : index
    %0 = vector.load %arg1[%c0, %c0_0, %c0_1] : memref<2x8x256xf32, #tpu.memory_space<vmem>>, vector<1x8x256xf32>
    %1 = vector.shape_cast %0 : vector<1x8x256xf32> to vector<8x256xf32>
    %c0_2 = arith.constant 0 : index
    %c0_3 = arith.constant 0 : index
    %2 = vector.load %arg5[%c0_2, %c0_3] : memref<72x512xf32, #tpu.memory_space<vmem>>, vector<8x256xf32>
    tpu.vector_store %arg5[%c0_2, %c0_3], %1 {strides = array<i32>} : memref<72x512xf32, #tpu.memory_space<vmem>>, vector<8x256xf32>,
    %c1 = arith.constant 1 : index
    %c0_4 = arith.constant 0 : index
    %c0_5 = arith.constant 0 : index
    %3 = vector.load %arg1[%c1, %c0_4, %c0_5] : memref<2x8x256xf32, #tpu.memory_space<vmem>>, vector<1x8x256xf32>
    %4 = vector.shape_cast %3 : vector<1x8x256xf32> to vector<8x256xf32>
    %c0_6 = arith.constant 0 : index
    %c256 = arith.constant 256 : index
    %5 = vector.load %arg5[%c0_6, %c256] : memref<72x512xf32, #tpu.memory_space<vmem>>, vector<8x256xf32>
    tpu.vector_store %arg5[%c0_6, %c256], %4 {strides = array<i32>} : memref<72x512xf32, #tpu.memory_space<vmem>>, vector<8x256xf32>,
    %c0_7 = arith.constant 0 : index
    %c0_8 = arith.constant 0 : index
    %c0_9 = arith.constant 0 : index
    %6 = vector.load %arg1[%c0_7, %c0_8, %c0_9] : memref<2x8x256xf32, #tpu.memory_space<vmem>>, vector<1x8x256xf32>
    %7 = vector.shape_cast %6 : vector<1x8x256xf32> to vector<8x256xf32>
    %c255_i32 = arith.constant 255 : i32
    %8 = tpu.dynamic_rotate %7 by %c255_i32 dim 1 : vector<8x256xf32>, i32 -> vector<8x256xf32>
    %c8 = arith.constant 8 : index
    %c0_10 = arith.constant 0 : index
    %9 = vector.load %arg5[%c8, %c0_10] : memref<72x512xf32, #tpu.memory_space<vmem>>, vector<8x256xf32>
    tpu.vector_store %arg5[%c8, %c0_10], %8 {strides = array<i32>} : memref<72x512xf32, #tpu.memory_space<vmem>>, vector<8x256xf32>,
    %c1_11 = arith.constant 1 : index
    %c0_12 = arith.constant 0 : index
    %c0_13 = arith.constant 0 : index
    %10 = vector.load %arg1[%c1_11, %c0_12, %c0_13] : memref<2x8x256xf32, #tpu.memory_space<vmem>>, vector<1x8x256xf32>
    %11 = vector.shape_cast %10 : vector<1x8x256xf32> to vector<8x256xf32>
    %c255_i32_14 = arith.constant 255 : i32
    %12 = tpu.dynamic_rotate %11 by %c255_i32_14 dim 1 : vector<8x256xf32>, i32 -> vector<8x256xf32>
    %c8_15 = arith.constant 8 : index
    %c256_16 = arith.constant 256 : index
    %13 = vector.load %arg5[%c8_15, %c256_16] : memref<72x512xf32, #tpu.memory_space<vmem>>, vector<8x256xf32>
    tpu.vector_store %arg5[%c8_15, %c256_16], %12 {strides = array<i32>} : memref<72x512xf32, #tpu.memory_space<vmem>>, vector<8x256xf32>,
    %c0_17 = arith.constant 0 : index
    %c0_18 = arith.constant 0 : index
    %c0_19 = arith.constant 0 : index
    %14 = vector.load %arg1[%c0_17, %c0_18, %c0_19] : memref<2x8x256xf32, #tpu.memory_space<vmem>>, vector<1x8x256xf32>
    %15 = vector.shape_cast %14 : vector<1x8x256xf32> to vector<8x256xf32>
    %c254_i32 = arith.constant 254 : i32
    %16 = tpu.dynamic_rotate %15 by %c254_i32 dim 1 : vector<8x256xf32>, i32 -> vector<8x256xf32>
    %c16 = arith.constant 16 : index
    %c0_20 = arith.constant 0 : index
    %17 = vector.load %arg5[%c16, %c0_20] : memref<72x512xf32, #tpu.memory_space<vmem>>, vector<8x256xf32>
    tpu.vector_store %arg5[%c16, %c0_20], %16 {strides = array<i32>} : memref<72x512xf32, #tpu.memory_space<vmem>>, vector<8x256xf32>,
    %c1_21 = arith.constant 1 : index
    %c0_22 = arith.constant 0 : index
    %c0_23 = arith.constant 0 : index
    %18 = vector.load %arg1[%c1_21, %c0_22, %c0_23] : memref<2x8x256xf32, #tpu.memory_space<vmem>>, vector<1x8x256xf32>
    %19 = vector.shape_cast %18 : vector<1x8x256xf32> to vector<8x256xf32>
    %c254_i32_24 = arith.constant 254 : i32
    %20 = tpu.dynamic_rotate %19 by %c254_i32_24 dim 1 : vector<8x256xf32>, i32 -> vector<8x256xf32>
    %c16_25 = arith.constant 16 : index
    %c256_26 = arith.constant 256 : index
    %21 = vector.load %arg5[%c16_25, %c256_26] : memref<72x512xf32, #tpu.memory_space<vmem>>, vector<8x256xf32>
    tpu.vector_store %arg5[%c16_25, %c256_26], %20 {strides = array<i32>} : memref<72x512xf32, #tpu.memory_space<vmem>>, vector<8x256xf32>,
    %c0_27 = arith.constant 0 : index
    %c0_28 = arith.constant 0 : index
    %c0_29 = arith.constant 0 : index
    %22 = vector.load %arg1[%c0_27, %c0_28, %c0_29] : memref<2x8x256xf32, #tpu.memory_space<vmem>>, vector<1x8x256xf32>
    %23 = vector.shape_cast %22 : vector<1x8x256xf32> to vector<8x256xf32>
    %c240_i32 = arith.constant 240 : i32
    %24 = tpu.dynamic_rotate %23 by %c240_i32 dim 1 : vector<8x256xf32>, i32 -> vector<8x256xf32>
    %c24 = arith.constant 24 : index
    %c0_30 = arith.constant 0 : index
    %25 = vector.load %arg5[%c24, %c0_30] : memref<72x512xf32, #tpu.memory_space<vmem>>, vector<8x256xf32>
    tpu.vector_store %arg5[%c24, %c0_30], %24 {strides = array<i32>} : memref<72x512xf32, #tpu.memory_space<vmem>>, vector<8x256xf32>,
    %c1_31 = arith.constant 1 : index
    %c0_32 = arith.constant 0 : index
    %c0_33 = arith.constant 0 : index
    %26 = vector.load %arg1[%c1_31, %c0_32, %c0_33] : memref<2x8x256xf32, #tpu.memory_space<vmem>>, vector<1x8x256xf32>
    %27 = vector.shape_cast %26 : vector<1x8x256xf32> to vector<8x256xf32>
    %c240_i32_34 = arith.constant 240 : i32
    %28 = tpu.dynamic_rotate %27 by %c240_i32_34 dim 1 : vector<8x256xf32>, i32 -> vector<8x256xf32>
    %c24_35 = arith.constant 24 : index
    %c256_36 = arith.constant 256 : index
    %29 = vector.load %arg5[%c24_35, %c256_36] : memref<72x512xf32, #tpu.memory_space<vmem>>, vector<8x256xf32>
    tpu.vector_store %arg5[%c24_35, %c256_36], %28 {strides = array<i32>} : memref<72x512xf32, #tpu.memory_space<vmem>>, vector<8x256xf32>,
    %c0_37 = arith.constant 0 : index
    %c0_38 = arith.constant 0 : index
    %c0_39 = arith.constant 0 : index
    %30 = vector.load %arg1[%c0_37, %c0_38, %c0_39] : memref<2x8x256xf32, #tpu.memory_space<vmem>>, vector<1x8x256xf32>
    %31 = vector.shape_cast %30 : vector<1x8x256xf32> to vector<8x256xf32>
    %c239_i32 = arith.constant 239 : i32
    %32 = tpu.dynamic_rotate %31 by %c239_i32 dim 1 : vector<8x256xf32>, i32 -> vector<8x256xf32>
    %c32 = arith.constant 32 : index
    %c0_40 = arith.constant 0 : index
    %33 = vector.load %arg5[%c32, %c0_40] : memref<72x512xf32, #tpu.memory_space<vmem>>, vector<8x256xf32>
    tpu.vector_store %arg5[%c32, %c0_40], %32 {strides = array<i32>} : memref<72x512xf32, #tpu.memory_space<vmem>>, vector<8x256xf32>,
    %c1_41 = arith.constant 1 : index
    %c0_42 = arith.constant 0 : index
    %c0_43 = arith.constant 0 : index
    %34 = vector.load %arg1[%c1_41, %c0_42, %c0_43] : memref<2x8x256xf32, #tpu.memory_space<vmem>>, vector<1x8x256xf32>
    %35 = vector.shape_cast %34 : vector<1x8x256xf32> to vector<8x256xf32>
    %c239_i32_44 = arith.constant 239 : i32
    %36 = tpu.dynamic_rotate %35 by %c239_i32_44 dim 1 : vector<8x256xf32>, i32 -> vector<8x256xf32>
    %c32_45 = arith.constant 32 : index
    %c256_46 = arith.constant 256 : index
    %37 = vector.load %arg5[%c32_45, %c256_46] : memref<72x512xf32, #tpu.memory_space<vmem>>, vector<8x256xf32>
    tpu.vector_store %arg5[%c32_45, %c256_46], %36 {strides = array<i32>} : memref<72x512xf32, #tpu.memory_space<vmem>>, vector<8x256xf32>,
    %c0_47 = arith.constant 0 : index
    %c0_48 = arith.constant 0 : index
    %c0_49 = arith.constant 0 : index
    %38 = vector.load %arg1[%c0_47, %c0_48, %c0_49] : memref<2x8x256xf32, #tpu.memory_space<vmem>>, vector<1x8x256xf32>
    %39 = vector.shape_cast %38 : vector<1x8x256xf32> to vector<8x256xf32>
    %c238_i32 = arith.constant 238 : i32
    %40 = tpu.dynamic_rotate %39 by %c238_i32 dim 1 : vector<8x256xf32>, i32 -> vector<8x256xf32>
    %c40 = arith.constant 40 : index
    %c0_50 = arith.constant 0 : index
    %41 = vector.load %arg5[%c40, %c0_50] : memref<72x512xf32, #tpu.memory_space<vmem>>, vector<8x256xf32>
    tpu.vector_store %arg5[%c40, %c0_50], %40 {strides = array<i32>} : memref<72x512xf32, #tpu.memory_space<vmem>>, vector<8x256xf32>,
    %c1_51 = arith.constant 1 : index
    %c0_52 = arith.constant 0 : index
    %c0_53 = arith.constant 0 : index
    %42 = vector.load %arg1[%c1_51, %c0_52, %c0_53] : memref<2x8x256xf32, #tpu.memory_space<vmem>>, vector<1x8x256xf32>
    %43 = vector.shape_cast %42 : vector<1x8x256xf32> to vector<8x256xf32>
    %c238_i32_54 = arith.constant 238 : i32
    %44 = tpu.dynamic_rotate %43 by %c238_i32_54 dim 1 : vector<8x256xf32>, i32 -> vector<8x256xf32>
    %c40_55 = arith.constant 40 : index
    %c256_56 = arith.constant 256 : index
    %45 = vector.load %arg5[%c40_55, %c256_56] : memref<72x512xf32, #tpu.memory_space<vmem>>, vector<8x256xf32>
    tpu.vector_store %arg5[%c40_55, %c256_56], %44 {strides = array<i32>} : memref<72x512xf32, #tpu.memory_space<vmem>>, vector<8x256xf32>,
    %c0_57 = arith.constant 0 : index
    %c0_58 = arith.constant 0 : index
    %c0_59 = arith.constant 0 : index
    %46 = vector.load %arg1[%c0_57, %c0_58, %c0_59] : memref<2x8x256xf32, #tpu.memory_space<vmem>>, vector<1x8x256xf32>
    %47 = vector.shape_cast %46 : vector<1x8x256xf32> to vector<8x256xf32>
    %c224_i32 = arith.constant 224 : i32
    %48 = tpu.dynamic_rotate %47 by %c224_i32 dim 1 : vector<8x256xf32>, i32 -> vector<8x256xf32>
    %c48 = arith.constant 48 : index
    %c0_60 = arith.constant 0 : index
    %49 = vector.load %arg5[%c48, %c0_60] : memref<72x512xf32, #tpu.memory_space<vmem>>, vector<8x256xf32>
    tpu.vector_store %arg5[%c48, %c0_60], %48 {strides = array<i32>} : memref<72x512xf32, #tpu.memory_space<vmem>>, vector<8x256xf32>,
    %c1_61 = arith.constant 1 : index
    %c0_62 = arith.constant 0 : index
    %c0_63 = arith.constant 0 : index
    %50 = vector.load %arg1[%c1_61, %c0_62, %c0_63] : memref<2x8x256xf32, #tpu.memory_space<vmem>>, vector<1x8x256xf32>
    %51 = vector.shape_cast %50 : vector<1x8x256xf32> to vector<8x256xf32>
    %c224_i32_64 = arith.constant 224 : i32
    %52 = tpu.dynamic_rotate %51 by %c224_i32_64 dim 1 : vector<8x256xf32>, i32 -> vector<8x256xf32>
    %c48_65 = arith.constant 48 : index
    %c256_66 = arith.constant 256 : index
    %53 = vector.load %arg5[%c48_65, %c256_66] : memref<72x512xf32, #tpu.memory_space<vmem>>, vector<8x256xf32>
    tpu.vector_store %arg5[%c48_65, %c256_66], %52 {strides = array<i32>} : memref<72x512xf32, #tpu.memory_space<vmem>>, vector<8x256xf32>,
    %c0_67 = arith.constant 0 : index
    %c0_68 = arith.constant 0 : index
    %c0_69 = arith.constant 0 : index
    %54 = vector.load %arg1[%c0_67, %c0_68, %c0_69] : memref<2x8x256xf32, #tpu.memory_space<vmem>>, vector<1x8x256xf32>
    %55 = vector.shape_cast %54 : vector<1x8x256xf32> to vector<8x256xf32>
    %c223_i32 = arith.constant 223 : i32
    %56 = tpu.dynamic_rotate %55 by %c223_i32 dim 1 : vector<8x256xf32>, i32 -> vector<8x256xf32>
    %c56 = arith.constant 56 : index
    %c0_70 = arith.constant 0 : index
    %57 = vector.load %arg5[%c56, %c0_70] : memref<72x512xf32, #tpu.memory_space<vmem>>, vector<8x256xf32>
    tpu.vector_store %arg5[%c56, %c0_70], %56 {strides = array<i32>} : memref<72x512xf32, #tpu.memory_space<vmem>>, vector<8x256xf32>,
    %c1_71 = arith.constant 1 : index
    %c0_72 = arith.constant 0 : index
    %c0_73 = arith.constant 0 : index
    %58 = vector.load %arg1[%c1_71, %c0_72, %c0_73] : memref<2x8x256xf32, #tpu.memory_space<vmem>>, vector<1x8x256xf32>
    %59 = vector.shape_cast %58 : vector<1x8x256xf32> to vector<8x256xf32>
    %c223_i32_74 = arith.constant 223 : i32
    %60 = tpu.dynamic_rotate %59 by %c223_i32_74 dim 1 : vector<8x256xf32>, i32 -> vector<8x256xf32>
    %c56_75 = arith.constant 56 : index
    %c256_76 = arith.constant 256 : index
    %61 = vector.load %arg5[%c56_75, %c256_76] : memref<72x512xf32, #tpu.memory_space<vmem>>, vector<8x256xf32>
    tpu.vector_store %arg5[%c56_75, %c256_76], %60 {strides = array<i32>} : memref<72x512xf32, #tpu.memory_space<vmem>>, vector<8x256xf32>,
    %c0_77 = arith.constant 0 : index
    %c0_78 = arith.constant 0 : index
    %c0_79 = arith.constant 0 : index
    %62 = vector.load %arg1[%c0_77, %c0_78, %c0_79] : memref<2x8x256xf32, #tpu.memory_space<vmem>>, vector<1x8x256xf32>
    %63 = vector.shape_cast %62 : vector<1x8x256xf32> to vector<8x256xf32>
    %c222_i32 = arith.constant 222 : i32
    %64 = tpu.dynamic_rotate %63 by %c222_i32 dim 1 : vector<8x256xf32>, i32 -> vector<8x256xf32>
    %c64 = arith.constant 64 : index
    %c0_80 = arith.constant 0 : index
    %65 = vector.load %arg5[%c64, %c0_80] : memref<72x512xf32, #tpu.memory_space<vmem>>, vector<8x256xf32>
    tpu.vector_store %arg5[%c64, %c0_80], %64 {strides = array<i32>} : memref<72x512xf32, #tpu.memory_space<vmem>>, vector<8x256xf32>,
    %c1_81 = arith.constant 1 : index
    %c0_82 = arith.constant 0 : index
    %c0_83 = arith.constant 0 : index
    %66 = vector.load %arg1[%c1_81, %c0_82, %c0_83] : memref<2x8x256xf32, #tpu.memory_space<vmem>>, vector<1x8x256xf32>
    %67 = vector.shape_cast %66 : vector<1x8x256xf32> to vector<8x256xf32>
    %c222_i32_84 = arith.constant 222 : i32
    %68 = tpu.dynamic_rotate %67 by %c222_i32_84 dim 1 : vector<8x256xf32>, i32 -> vector<8x256xf32>
    %c64_85 = arith.constant 64 : index
    %c256_86 = arith.constant 256 : index
    %69 = vector.load %arg5[%c64_85, %c256_86] : memref<72x512xf32, #tpu.memory_space<vmem>>, vector<8x256xf32>
    tpu.vector_store %arg5[%c64_85, %c256_86], %68 {strides = array<i32>} : memref<72x512xf32, #tpu.memory_space<vmem>>, vector<8x256xf32>,
    %c0_87 = arith.constant 0 : index
    %c0_88 = arith.constant 0 : index
    %70 = vector.load %arg2[%c0_87, %c0_88] : memref<64x72xf32, #tpu.memory_space<vmem>>, vector<64x72xf32>
    %c0_89 = arith.constant 0 : index
    %c0_90 = arith.constant 0 : index
    %71 = vector.load %arg5[%c0_89, %c0_90] : memref<72x512xf32, #tpu.memory_space<vmem>>, vector<72x512xf32>
    %cst = arith.constant dense<0.000000e+00> : vector<64x512xf32>
    %72 = tpu.matmul %70, %71, %cst {dimension_numbers = #tpu.dot_dimension_numbers<[1], [0], [0], [1], [0, 0, 1, 1], [], []>} : vector<64x72xf32>, vector<72x512xf32>, vector<64x512xf32> -> vector<64x512xf32>
    %c0_91 = arith.constant 0 : index
    %c0_92 = arith.constant 0 : index
    %73 = vector.load %arg3[%c0_91, %c0_92] : memref<64x1xf32, #tpu.memory_space<vmem>>, vector<64x1xf32>
    %74 = vector.broadcast %73 : vector<64x1xf32> to vector<64x512xf32>
    %75 = arith.addf %72, %74 : vector<64x512xf32>
    %cst_93 = arith.constant 0.000000e+00 : f32
    %76 = vector.broadcast %cst_93 : f32 to vector<64x512xf32>
    %77 = arith.maximumf %75, %76 : vector<64x512xf32>
    %78 = vector.extract_strided_slice %77 {offsets = [0, 0], sizes = [64, 224], strides = [1, 1]} : vector<64x512xf32> to vector<64x224xf32>
    %c0_94 = arith.constant 0 : index
    %c0_95 = arith.constant 0 : index
    %c0_96 = arith.constant 0 : index
    %79 = vector.load %arg4[%c0_94, %c0_95, %c0_96] : memref<2x64x224xf32, #tpu.memory_space<vmem>>, vector<1x64x224xf32>
    %80 = vector.shape_cast %79 : vector<1x64x224xf32> to vector<64x224xf32>
    %81 = vector.shape_cast %78 : vector<64x224xf32> to vector<1x64x224xf32>
    tpu.vector_store %arg4[%c0_94, %c0_95, %c0_96], %81 {strides = array<i32>} : memref<2x64x224xf32, #tpu.memory_space<vmem>>, vector<1x64x224xf32>,
    %82 = vector.extract_strided_slice %77 {offsets = [0, 256], sizes = [64, 224], strides = [1, 1]} : vector<64x512xf32> to vector<64x224xf32>
    %c1_97 = arith.constant 1 : index
    %c0_98 = arith.constant 0 : index
    %c0_99 = arith.constant 0 : index
    %83 = vector.load %arg4[%c1_97, %c0_98, %c0_99] : memref<2x64x224xf32, #tpu.memory_space<vmem>>, vector<1x64x224xf32>
    %84 = vector.shape_cast %83 : vector<1x64x224xf32> to vector<64x224xf32>
    %85 = vector.shape_cast %82 : vector<64x224xf32> to vector<1x64x224xf32>
    tpu.vector_store %arg4[%c1_97, %c0_98, %c0_99], %85 {strides = array<i32>} : memref<2x64x224xf32, #tpu.memory_space<vmem>>, vector<1x64x224xf32>,
    return
  }
  func.func @transform_0(%arg0: i32) -> (i32, i32, i32) {
    %c0_i32 = arith.constant 0 : i32
    %c0_i32_0 = arith.constant 0 : i32
    %c0_i32_1 = arith.constant 0 : i32
    return %arg0, %c0_i32, %c0_i32_0 : i32, i32, i32
  }
  func.func @transform_1(%arg0: i32) -> (i32, i32) {
    %c0_i32 = arith.constant 0 : i32
    %c0_i32_0 = arith.constant 0 : i32
    %c0_i32_1 = arith.constant 0 : i32
    return %c0_i32, %c0_i32_0 : i32, i32
  }
  func.func @transform_2(%arg0: i32) -> (i32, i32) {
    %c0_i32 = arith.constant 0 : i32
    %c0_i32_0 = arith.constant 0 : i32
    %c0_i32_1 = arith.constant 0 : i32
    return %c0_i32, %c0_i32_0 : i32, i32
  }
  func.func @transform_3(%arg0: i32) -> (i32, i32, i32) {
    %c0_i32 = arith.constant 0 : i32
    %c0_i32_0 = arith.constant 0 : i32
    %c0_i32_1 = arith.constant 0 : i32
    return %arg0, %c0_i32, %c0_i32_0 : i32, i32, i32
  }
}

</mosaic_0001>

<llo_original>
// kernel: tpu_custom_call.1
$region0: #{tpu_custom_call.1}
  #allocation0 [shape = 'u32[]', space=smem, size = 0x4, offset = 0x4, fixed_abs, tag = 'smem constant byte address 0x4 - core index']
  #allocation1 [shape = 'u32[144,128]{1,0:T(1,128)}', space=vmem, size = 0x12000, scoped, tag = 'internal scratch']
  #allocation2 [shape = 'f32[72,512]{1,0:T(8,128)}', space=vmem, size = 0x24000, scoped, tag = 'scratch operand']
  %s0 = inlined_call_operand.hbm [shape: f32[2,8,256], index: 0, kind: input, shape index: {}]
  %s1 = inlined_call_operand.vmem [shape: f32[64,72], index: 1, kind: input, shape index: {}]
  %s2 = inlined_call_operand.vmem [shape: f32[64,1], index: 2, kind: input, shape index: {}]
  %s3 = inlined_call_operand.hbm [shape: f32[2,64,224], index: 3, kind: output, shape index: {}]
  %s4 = sld [smem:[#allocation0]]
  $region26: #{tpu_custom_call.1} parent=0
    _
  %s6 = ssub.s32 1, %s4
  %s7 = scalar_select 0, %s6, %s4
  $region1: #{tpu_custom_call.1} parent=0
    #allocation3 [shape = 'u8[16384]{0}', space=vmem, size = 0x4000, scoped, tag = 'input window, operand 0, single buffered']
    #allocation4 [shape = 's32[1]{0}', space=sflag, size = 0x4, scoped, tag = 'scoped memory for tpu_custom_call.1']
    #allocation5 [shape = 's32[1]{0}', space=sflag, size = 0x4, scoped, tag = 'scoped memory for tpu_custom_call.1']
    #allocation6 [shape = 'u8[131072]{0}', space=vmem, size = 0x20000, scoped, tag = 'output window, operand 0, single buffered']
    %8 = vsyncpa [#allocation4], 0
    %9 = vsyncpa [#allocation5], 0
    // Predicated region
    $region2: #{tpu_custom_call.1} parent=1 // pred_check
      _
    $region3: #{tpu_custom_call.1} parent=1 // pred_check_branch
      %11 = sbr.rel (0) target = $region5
    $region4: #{tpu_custom_call.1} parent=1 // pred_region
      %s13 = ssub.s32 512, 512
      %14 = vsyncadd [#allocation4], %s13
      %s15 = sshll.u32 [#allocation3], 4
      %s16 = int_to_ptr.vmem [resolvable:$true] %s15
      %21 = dma.hbm_to_vmem [thread:$0]  %s0, 512, %s16, [#allocation4], 256, 256, 16
    $region5: #{tpu_custom_call.1} parent=1 // pred_fallthru
      _
    // Predicated region
    $region6: #{tpu_custom_call.1} parent=1 // pred_check
      _
    $region7: #{tpu_custom_call.1} parent=1 // pred_check_branch
      %23 = sbr.rel (0) target = $region9
    $region8: #{tpu_custom_call.1} parent=1 // pred_region
      _
    $region9: #{tpu_custom_call.1} parent=1 // pred_fallthru
      _
    // Predicated region
    $region10: #{tpu_custom_call.1} parent=1 // pred_check
      _
    $region11: #{tpu_custom_call.1} parent=1 // pred_check_branch
      %25 = sbr.rel (0) target = $region13
    $region12: #{tpu_custom_call.1} parent=1 // pred_region
      _
    $region13: #{tpu_custom_call.1} parent=1 // pred_fallthru
      _
    // Predicated region
    $region14: #{tpu_custom_call.1} parent=1 // pred_check
      _
    $region15: #{tpu_custom_call.1} parent=1 // pred_check_branch
      %27 = sbr.rel (0) target = $region17
    $region16: #{tpu_custom_call.1} parent=1 // pred_region
      %28 = dma.done [#allocation4], 512
    $region17: #{tpu_custom_call.1} parent=1 // pred_fallthru
      _
    %v29 = vld [vmem:[#allocation3] sm:$0xff]
    %v30 = vld [vmem:[#allocation3 + $0x8] sm:$0xff]
    %31 = vst [vmem:[#allocation2] sm:$0xff] %v29
    %32 = vst [vmem:[#allocation2 + $0x8] sm:$0xff] %v30
    %s33 = scalar_lea.vmem [#allocation3], 16
    %v34 = vld [vmem:[%s33] sm:$0xff]
    %v35 = vld [vmem:[%s33 + $0x8] sm:$0xff]
    %36 = vst [vmem:[#allocation2 + $0x10] sm:$0xff] %v34
    %37 = vst [vmem:[#allocation2 + $0x18] sm:$0xff] %v35
    %v38 = vld [vmem:[#allocation3] sm:$0xff]
    %v39 = vld [vmem:[#allocation3 + $0x8] sm:$0xff]
    %40 = vrot.lane.b32.xlu0 %v38, 127
    %v41 = vpop.permute.xlu0 %40
    %42 = vrot.lane.b32.xlu0 %v39, 127
    %v43 = vpop.permute.xlu0 %42
    %v44 = vlaneseq
    %v45 = vand.u32 %v44, 127
    %vm46 = vcmp.lt.s32.totalorder %v45, 127
    %v47 = vsel %vm46, %v41, %v43
    %v48 = vsel %vm46, %v43, %v41
    %49 = vst [vmem:[#allocation2 + $0x20] sm:$0xff] %v47
    %50 = vst [vmem:[#allocation2 + $0x28] sm:$0xff] %v48
    %v51 = vld [vmem:[%s33] sm:$0xff]
    %v52 = vld [vmem:[%s33 + $0x8] sm:$0xff]
    %53 = vrot.lane.b32.xlu0 %v51, 127
    %v54 = vpop.permute.xlu0 %53
    %55 = vrot.lane.b32.xlu0 %v52, 127
    %v56 = vpop.permute.xlu0 %55
    %v57 = vsel %vm46, %v54, %v56
    %v58 = vsel %vm46, %v56, %v54
    %59 = vst [vmem:[#allocation2 + $0x30] sm:$0xff] %v57
    %60 = vst [vmem:[#allocation2 + $0x38] sm:$0xff] %v58
    %v61 = vld [vmem:[#allocation3] sm:$0xff]
    %v62 = vld [vmem:[#allocation3 + $0x8] sm:$0xff]
    %63 = vrot.lane.b32.xlu0 %v61, 126
    %v64 = vpop.permute.xlu0 %63
    %65 = vrot.lane.b32.xlu0 %v62, 126
    %v66 = vpop.permute.xlu0 %65
    %vm67 = vcmp.lt.s32.totalorder %v45, 126
    %v68 = vsel %vm67, %v64, %v66
    %v69 = vsel %vm67, %v66, %v64
    %70 = vst [vmem:[#allocation2 + $0x40] sm:$0xff] %v68
    %71 = vst [vmem:[#allocation2 + $0x48] sm:$0xff] %v69
    %v72 = vld [vmem:[%s33] sm:$0xff]
    %v73 = vld [vmem:[%s33 + $0x8] sm:$0xff]
    %74 = vrot.lane.b32.xlu0 %v72, 126
    %v75 = vpop.permute.xlu0 %74
    %76 = vrot.lane.b32.xlu0 %v73, 126
    %v77 = vpop.permute.xlu0 %76
    %v78 = vsel %vm67, %v75, %v77
    %v79 = vsel %vm67, %v77, %v75
    %80 = vst [vmem:[#allocation2 + $0x50] sm:$0xff] %v78
    %81 = vst [vmem:[#allocation2 + $0x58] sm:$0xff] %v79
    %v82 = vld [vmem:[#allocation3] sm:$0xff]
    %v83 = vld [vmem:[#allocation3 + $0x8] sm:$0xff]
    %84 = vrot.lane.b32.xlu0 %v82, 112
    %v85 = vpop.permute.xlu0 %84
    %86 = vrot.lane.b32.xlu0 %v83, 112
    %v87 = vpop.permute.xlu0 %86
    %vm88 = vcmp.lt.s32.totalorder %v45, 112
    %v89 = vsel %vm88, %v85, %v87
    %v90 = vsel %vm88, %v87, %v85
    %91 = vst [vmem:[#allocation2 + $0x60] sm:$0xff] %v89
    %92 = vst [vmem:[#allocation2 + $0x68] sm:$0xff] %v90
    %v93 = vld [vmem:[%s33] sm:$0xff]
    %v94 = vld [vmem:[%s33 + $0x8] sm:$0xff]
    %95 = vrot.lane.b32.xlu0 %v93, 112
    %v96 = vpop.permute.xlu0 %95
    %97 = vrot.lane.b32.xlu0 %v94, 112
    %v98 = vpop.permute.xlu0 %97
    %v99 = vsel %vm88, %v96, %v98
    %v100 = vsel %vm88, %v98, %v96
    %101 = vst [vmem:[#allocation2 + $0x70] sm:$0xff] %v99
    %102 = vst [vmem:[#allocation2 + $0x78] sm:$0xff] %v100
    %v103 = vld [vmem:[#allocation3] sm:$0xff]
    %v104 = vld [vmem:[#allocation3 + $0x8] sm:$0xff]
    %105 = vrot.lane.b32.xlu0 %v103, 111
    %v106 = vpop.permute.xlu0 %105
    %107 = vrot.lane.b32.xlu0 %v104, 111
    %v108 = vpop.permute.xlu0 %107
    %vm109 = vcmp.lt.s32.totalorder %v45, 111
    %v110 = vsel %vm109, %v106, %v108
    %v111 = vsel %vm109, %v108, %v106
    %112 = vst [vmem:[#allocation2 + $0x80] sm:$0xff] %v110
    %113 = vst [vmem:[#allocation2 + $0x88] sm:$0xff] %v111
    %v114 = vld [vmem:[%s33] sm:$0xff]
    %v115 = vld [vmem:[%s33 + $0x8] sm:$0xff]
    %116 = vrot.lane.b32.xlu0 %v114, 111
    %v117 = vpop.permute.xlu0 %116
    %118 = vrot.lane.b32.xlu0 %v115, 111
    %v119 = vpop.permute.xlu0 %118
    %v120 = vsel %vm109, %v117, %v119
    %v121 = vsel %vm109, %v119, %v117
    %122 = vst [vmem:[#allocation2 + $0x90] sm:$0xff] %v120
    %123 = vst [vmem:[#allocation2 + $0x98] sm:$0xff] %v121
    %v124 = vld [vmem:[#allocation3] sm:$0xff]
    %v125 = vld [vmem:[#allocation3 + $0x8] sm:$0xff]
    %126 = vrot.lane.b32.xlu0 %v124, 110
    %v127 = vpop.permute.xlu0 %126
    %128 = vrot.lane.b32.xlu0 %v125, 110
    %v129 = vpop.permute.xlu0 %128
    %vm130 = vcmp.lt.s32.totalorder %v45, 110
    %v131 = vsel %vm130, %v127, %v129
    %v132 = vsel %vm130, %v129, %v127
    %133 = vst [vmem:[#allocation2 + $0xa0] sm:$0xff] %v131
    %134 = vst [vmem:[#allocation2 + $0xa8] sm:$0xff] %v132
    %v135 = vld [vmem:[%s33] sm:$0xff]
    %v136 = vld [vmem:[%s33 + $0x8] sm:$0xff]
    %137 = vrot.lane.b32.xlu0 %v135, 110
    %v138 = vpop.permute.xlu0 %137
    %139 = vrot.lane.b32.xlu0 %v136, 110
    %v140 = vpop.permute.xlu0 %139
    %v141 = vsel %vm130, %v138, %v140
    %v142 = vsel %vm130, %v140, %v138
    %143 = vst [vmem:[#allocation2 + $0xb0] sm:$0xff] %v141
    %144 = vst [vmem:[#allocation2 + $0xb8] sm:$0xff] %v142
    %v145 = vld [vmem:[#allocation3] sm:$0xff]
    %v146 = vld [vmem:[#allocation3 + $0x8] sm:$0xff]
    %147 = vrot.lane.b32.xlu0 %v145, 96
    %v148 = vpop.permute.xlu0 %147
    %149 = vrot.lane.b32.xlu0 %v146, 96
    %v150 = vpop.permute.xlu0 %149
    %vm151 = vcmp.lt.s32.totalorder %v45, 96
    %v152 = vsel %vm151, %v148, %v150
    %v153 = vsel %vm151, %v150, %v148
    %154 = vst [vmem:[#allocation2 + $0xc0] sm:$0xff] %v152
    %155 = vst [vmem:[#allocation2 + $0xc8] sm:$0xff] %v153
    %v156 = vld [vmem:[%s33] sm:$0xff]
    %v157 = vld [vmem:[%s33 + $0x8] sm:$0xff]
    %158 = vrot.lane.b32.xlu0 %v156, 96
    %v159 = vpop.permute.xlu0 %158
    %160 = vrot.lane.b32.xlu0 %v157, 96
    %v161 = vpop.permute.xlu0 %160
    %v162 = vsel %vm151, %v159, %v161
    %v163 = vsel %vm151, %v161, %v159
    %164 = vst [vmem:[#allocation2 + $0xd0] sm:$0xff] %v162
    %165 = vst [vmem:[#allocation2 + $0xd8] sm:$0xff] %v163
    %v166 = vld [vmem:[#allocation3] sm:$0xff]
    %v167 = vld [vmem:[#allocation3 + $0x8] sm:$0xff]
    %168 = vrot.lane.b32.xlu0 %v166, 95
    %v169 = vpop.permute.xlu0 %168
    %170 = vrot.lane.b32.xlu0 %v167, 95
    %v171 = vpop.permute.xlu0 %170
    %vm172 = vcmp.lt.s32.totalorder %v45, 95
    %v173 = vsel %vm172, %v169, %v171
    %v174 = vsel %vm172, %v171, %v169
    %175 = vst [vmem:[#allocation2 + $0xe0] sm:$0xff] %v173
    %176 = vst [vmem:[#allocation2 + $0xe8] sm:$0xff] %v174
    %v177 = vld [vmem:[%s33] sm:$0xff]
    %v178 = vld [vmem:[%s33 + $0x8] sm:$0xff]
    %179 = vrot.lane.b32.xlu0 %v177, 95
    %v180 = vpop.permute.xlu0 %179
    %181 = vrot.lane.b32.xlu0 %v178, 95
    %v182 = vpop.permute.xlu0 %181
    %v183 = vsel %vm172, %v180, %v182
    %v184 = vsel %vm172, %v182, %v180
    %185 = vst [vmem:[#allocation2 + $0xf0] sm:$0xff] %v183
    %186 = vst [vmem:[#allocation2 + $0xf8] sm:$0xff] %v184
    %v187 = vld [vmem:[#allocation3] sm:$0xff]
    %v188 = vld [vmem:[#allocation3 + $0x8] sm:$0xff]
    %189 = vrot.lane.b32.xlu0 %v187, 94
    %v190 = vpop.permute.xlu0 %189
    %191 = vrot.lane.b32.xlu0 %v188, 94
    %v192 = vpop.permute.xlu0 %191
    %vm193 = vcmp.lt.s32.totalorder %v45, 94
    %v194 = vsel %vm193, %v190, %v192
    %v195 = vsel %vm193, %v192, %v190
    %196 = vst [vmem:[#allocation2 + $0x100] sm:$0xff] %v194
    %197 = vst [vmem:[#allocation2 + $0x108] sm:$0xff] %v195
    %v198 = vld [vmem:[%s33] sm:$0xff]
    %v199 = vld [vmem:[%s33 + $0x8] sm:$0xff]
    %200 = vrot.lane.b32.xlu0 %v198, 94
    %v201 = vpop.permute.xlu0 %200
    %202 = vrot.lane.b32.xlu0 %v199, 94
    %v203 = vpop.permute.xlu0 %202
    %v204 = vsel %vm193, %v201, %v203
    %v205 = vsel %vm193, %v203, %v201
    %206 = vst [vmem:[#allocation2 + $0x110] sm:$0xff] %v204
    %207 = vst [vmem:[#allocation2 + $0x118] sm:$0xff] %v205
    %v208 = vld [vmem:[%s1] sm:$0xff]
    %v209 = vld [vmem:[%s1 + $0x8] sm:$0xff]
    %v210 = vld [vmem:[%s1 + $0x10] sm:$0xff]
    %v211 = vld [vmem:[%s1 + $0x18] sm:$0xff]
    %v212 = vld [vmem:[%s1 + $0x20] sm:$0xff]
    %v213 = vld [vmem:[%s1 + $0x28] sm:$0xff]
    %v214 = vld [vmem:[%s1 + $0x30] sm:$0xff]
    %v215 = vld [vmem:[%s1 + $0x38] sm:$0xff]
    %v216 = vld [vmem:[#allocation2] sm:$0xff]
    %v217 = vld [vmem:[#allocation2 + $0x8] sm:$0xff]
    %v218 = vld [vmem:[#allocation2 + $0x10] sm:$0xff]
    %v219 = vld [vmem:[#allocation2 + $0x18] sm:$0xff]
    %v220 = vld [vmem:[#allocation2 + $0x20] sm:$0xff]
    %v221 = vld [vmem:[#allocation2 + $0x28] sm:$0xff]
    %v222 = vld [vmem:[#allocation2 + $0x30] sm:$0xff]
    %v223 = vld [vmem:[#allocation2 + $0x38] sm:$0xff]
    %v224 = vld [vmem:[#allocation2 + $0x40] sm:$0xff]
    %v225 = vld [vmem:[#allocation2 + $0x48] sm:$0xff]
    %v226 = vld [vmem:[#allocation2 + $0x50] sm:$0xff]
    %v227 = vld [vmem:[#allocation2 + $0x58] sm:$0xff]
    %v228 = vld [vmem:[#allocation2 + $0x60] sm:$0xff]
    %v229 = vld [vmem:[#allocation2 + $0x68] sm:$0xff]
    %v230 = vld [vmem:[#allocation2 + $0x70] sm:$0xff]
    %v231 = vld [vmem:[#allocation2 + $0x78] sm:$0xff]
    %v232 = vld [vmem:[#allocation2 + $0x80] sm:$0xff]
    %v233 = vld [vmem:[#allocation2 + $0x88] sm:$0xff]
    %v234 = vld [vmem:[#allocation2 + $0x90] sm:$0xff]
    %v235 = vld [vmem:[#allocation2 + $0x98] sm:$0xff]
    %v236 = vld [vmem:[#allocation2 + $0xa0] sm:$0xff]
    %v237 = vld [vmem:[#allocation2 + $0xa8] sm:$0xff]
    %v238 = vld [vmem:[#allocation2 + $0xb0] sm:$0xff]
    %v239 = vld [vmem:[#allocation2 + $0xb8] sm:$0xff]
    %v240 = vld [vmem:[#allocation2 + $0xc0] sm:$0xff]
    %v241 = vld [vmem:[#allocation2 + $0xc8] sm:$0xff]
    %v242 = vld [vmem:[#allocation2 + $0xd0] sm:$0xff]
    %v243 = vld [vmem:[#allocation2 + $0xd8] sm:$0xff]
    %v244 = vld [vmem:[#allocation2 + $0xe0] sm:$0xff]
    %v245 = vld [vmem:[#allocation2 + $0xe8] sm:$0xff]
    %v246 = vld [vmem:[#allocation2 + $0xf0] sm:$0xff]
    %v247 = vld [vmem:[#allocation2 + $0xf8] sm:$0xff]
    %v248 = vld [vmem:[#allocation2 + $0x100] sm:$0xff]
    %v249 = vld [vmem:[#allocation2 + $0x108] sm:$0xff]
    %v250 = vld [vmem:[#allocation2 + $0x110] sm:$0xff]
    %v251 = vld [vmem:[#allocation2 + $0x118] sm:$0xff]
    %v252 = vld [vmem:[%s2] sm:$0xff]
    %v253 = vld [vmem:[%s2 + $0x8] sm:$0xff]
    %v254 = vld [vmem:[%s2 + $0x10] sm:$0xff]
    %v255 = vld [vmem:[%s2 + $0x18] sm:$0xff]
    %v256 = vld [vmem:[%s2 + $0x20] sm:$0xff]
    %v257 = vld [vmem:[%s2 + $0x28] sm:$0xff]
    %v258 = vld [vmem:[%s2 + $0x30] sm:$0xff]
    %v259 = vld [vmem:[%s2 + $0x38] sm:$0xff]
    %261 = vset.pattern.permute.xlu0 0
    %262 = vperm.xlu0 %261, %v252
    %v263 = vpop.permute.xlu0 %262
    %266 = vset.pattern.permute.xlu0 0
    %267 = vperm.xlu0 %266, %v253
    %v268 = vpop.permute.xlu0 %267
    %271 = vset.pattern.permute.xlu0 0
    %272 = vperm.xlu0 %271, %v254
    %v273 = vpop.permute.xlu0 %272
    %276 = vset.pattern.permute.xlu0 0
    %277 = vperm.xlu0 %276, %v255
    %v278 = vpop.permute.xlu0 %277
    %281 = vset.pattern.permute.xlu0 0
    %282 = vperm.xlu0 %281, %v256
    %v283 = vpop.permute.xlu0 %282
    %286 = vset.pattern.permute.xlu0 0
    %287 = vperm.xlu0 %286, %v257
    %v288 = vpop.permute.xlu0 %287
    %291 = vset.pattern.permute.xlu0 0
    %292 = vperm.xlu0 %291, %v258
    %v293 = vpop.permute.xlu0 %292
    %296 = vset.pattern.permute.xlu0 0
    %297 = vperm.xlu0 %296, %v259
    %v298 = vpop.permute.xlu0 %297
    %vm300 = vcmask 588800
    %v302 = vsel %vm300, %v208, 0
    %v305 = vsel %vm300, %v209, 0
    %v308 = vsel %vm300, %v210, 0
    %v311 = vsel %vm300, %v211, 0
    %v314 = vsel %vm300, %v212, 0
    %v317 = vsel %vm300, %v213, 0
    %v320 = vsel %vm300, %v214, 0
    %v323 = vsel %vm300, %v215, 0
    %325 = vmatprep.subr.mxu0 %v217
    %326 = vmatpush1.msra.mxu0 %v216
    %327 = vmatprep.subr.mxu0 %v221
    %328 = vmatpush1.msra.mxu0 %v220
    %329 = vmatprep.subr.mxu0 %v225
    %330 = vmatpush1.msra.mxu0 %v224
    %331 = vmatprep.subr.mxu0 %v229
    %332 = vmatpush1.msra.mxu0 %v228
    %333 = vmatprep.subr.mxu0 %v233
    %334 = vmatpush1.msra.mxu0 %v232
    %335 = vmatprep.subr.mxu0 %v237
    %336 = vmatpush1.msra.mxu0 %v236
    %337 = vmatprep.subr.mxu0 %v241
    %338 = vmatpush1.msra.mxu0 %v240
    %339 = vmatprep.subr.mxu0 %v245
    %340 = vmatpush1.msra.mxu0 %v244
    %341 = vmatprep.subr.mxu0 %v249
    %342 = vmatpush1.msra.mxu0 %v248
    %343 = vmatprep.subr.mxu0 0.0
    %344 = vmatpush1.msra.mxu0 0.0
    %345 = vmatprep.subr.mxu0 0.0
    %346 = vmatpush1.msra.mxu0 0.0
    %347 = vmatprep.subr.mxu0 0.0
    %348 = vmatpush1.msra.mxu0 0.0
    %349 = vmatprep.subr.mxu0 0.0
    %350 = vmatpush1.msra.mxu0 0.0
    %351 = vmatprep.subr.mxu0 0.0
    %352 = vmatpush1.msra.mxu0 0.0
    %353 = vmatprep.subr.mxu0 0.0
    %354 = vmatpush1.msra.mxu0 0.0
    %355 = vmatprep.subr.mxu0 0.0
    %356 = vmatpush1.msra.mxu0 0.0
    %357 = vmatprep.subr.mxu0 0.0
    %358 = vmatpush1.msra.mxu0 0.0
    %359 = vmatprep.subr.mxu0 0.0
    %360 = vmatpush1.msra.mxu0 0.0
    %361 = vmatprep.subr.mxu0 0.0
    %362 = vmatpush1.msra.mxu0 0.0
    %363 = vmatprep.subr.mxu0 0.0
    %364 = vmatpush1.msra.mxu0 0.0
    %365 = vmatprep.subr.mxu0 0.0
    %366 = vmatpush1.msra.mxu0 0.0
    %367 = vmatprep.subr.mxu0 0.0
    %368 = vmatpush1.msra.mxu0 0.0
    %369 = vmatprep.subr.mxu0 0.0
    %370 = vmatpush1.msra.mxu0 0.0
    %371 = vmatprep.subr.mxu0 0.0
    %372 = vmatpush1.msra.mxu0 0.0
    %373 = vmatprep.subr.mxu0 0.0
    %374 = vmatpush1.msra.mxu0 0.0
    %375 = vmatprep.subr.mxu0 0.0
    %376 = vmatpush1.msra.mxu0 0.0
    %377 = vmatprep.subr.mxu0 0.0
    %378 = vmatpush1.msra.mxu0 0.0
    %379 = vmatprep.subr.mxu0 0.0
    %380 = vmatpush1.msra.mxu0 0.0
    %381 = vmatprep.subr.mxu0 0.0
    %382 = vmatpush1.msra.mxu0 0.0
    %383 = vmatprep.subr.mxu0 0.0
    %384 = vmatpush1.msra.mxu0 0.0
    %385 = vmatprep.subr.mxu0 0.0
    %386 = vmatpush1.msra.mxu0 0.0
    %387 = vmatprep.subr.mxu0 0.0
    %388 = vmatpush1.msra.mxu0 0.0
    %389 = vmatprep.mubr.f32.mxu0 0.0
    %390 = vmatmul.mubr.f32.gmra.mrb[0].mxu0 %v302
    %v391 = vpop.f32.mrb[0].mxu0
    %v392 = vadd.f32 %v263, %v391
    %v393 = vpop.f32.mrb[0].mxu0
    %v394 = vadd.f32 %v263, %v393
    %395 = vmatprep.mubr.f32.mxu0 0.0
    %396 = vmatmul.mubr.f32.gmra.mrb[0].mxu0 %v305
    %v397 = vpop.f32.mrb[0].mxu0
    %v398 = vadd.f32 %v268, %v397
    %v399 = vpop.f32.mrb[0].mxu0
    %v400 = vadd.f32 %v268, %v399
    %401 = vmatprep.mubr.f32.mxu0 0.0
    %402 = vmatmul.mubr.f32.gmra.mrb[0].mxu0 %v308
    %v403 = vpop.f32.mrb[0].mxu0
    %v404 = vadd.f32 %v273, %v403
    %v405 = vpop.f32.mrb[0].mxu0
    %v406 = vadd.f32 %v273, %v405
    %407 = vmatprep.mubr.f32.mxu0 0.0
    %408 = vmatmul.mubr.f32.gmra.mrb[0].mxu0 %v311
    %v409 = vpop.f32.mrb[0].mxu0
    %v410 = vadd.f32 %v278, %v409
    %v411 = vpop.f32.mrb[0].mxu0
    %v412 = vadd.f32 %v278, %v411
    %413 = vmatprep.mubr.f32.mxu0 0.0
    %414 = vmatmul.mubr.f32.gmra.mrb[0].mxu0 %v314
    %v415 = vpop.f32.mrb[0].mxu0
    %v416 = vadd.f32 %v283, %v415
    %v417 = vpop.f32.mrb[0].mxu0
    %v418 = vadd.f32 %v283, %v417
    %419 = vmatprep.mubr.f32.mxu0 0.0
    %420 = vmatmul.mubr.f32.gmra.mrb[0].mxu0 %v317
    %v421 = vpop.f32.mrb[0].mxu0
    %v422 = vadd.f32 %v288, %v421
    %v423 = vpop.f32.mrb[0].mxu0
    %v424 = vadd.f32 %v288, %v423
    %425 = vmatprep.mubr.f32.mxu0 0.0
    %426 = vmatmul.mubr.f32.gmra.mrb[0].mxu0 %v320
    %v427 = vpop.f32.mrb[0].mxu0
    %v428 = vadd.f32 %v293, %v427
    %v429 = vpop.f32.mrb[0].mxu0
    %v430 = vadd.f32 %v293, %v429
    %431 = vmatprep.mubr.f32.mxu0 0.0
    %432 = vmatmul.mubr.f32.gmra.mrb[0].mxu0 %v323
    %v433 = vpop.f32.mrb[0].mxu0
    %v434 = vadd.f32 %v298, %v433
    %v435 = vpop.f32.mrb[0].mxu0
    %v436 = vadd.f32 %v298, %v435
    %437 = vdwg.mxu0
    %438 = vmatprep.subr.mxu0 %v219
    %439 = vmatpush1.msra.mxu0 %v218
    %440 = vmatprep.subr.mxu0 %v223
    %441 = vmatpush1.msra.mxu0 %v222
    %442 = vmatprep.subr.mxu0 %v227
    %443 = vmatpush1.msra.mxu0 %v226
    %444 = vmatprep.subr.mxu0 %v231
    %445 = vmatpush1.msra.mxu0 %v230
    %446 = vmatprep.subr.mxu0 %v235
    %447 = vmatpush1.msra.mxu0 %v234
    %448 = vmatprep.subr.mxu0 %v239
    %449 = vmatpush1.msra.mxu0 %v238
    %450 = vmatprep.subr.mxu0 %v243
    %451 = vmatpush1.msra.mxu0 %v242
    %452 = vmatprep.subr.mxu0 %v247
    %453 = vmatpush1.msra.mxu0 %v246
    %454 = vmatprep.subr.mxu0 %v251
    %455 = vmatpush1.msra.mxu0 %v250
    %456 = vmatprep.subr.mxu0 0.0
    %457 = vmatpush1.msra.mxu0 0.0
    %458 = vmatprep.subr.mxu0 0.0
    %459 = vmatpush1.msra.mxu0 0.0
    %460 = vmatprep.subr.mxu0 0.0
    %461 = vmatpush1.msra.mxu0 0.0
    %462 = vmatprep.subr.mxu0 0.0
    %463 = vmatpush1.msra.mxu0 0.0
    %464 = vmatprep.subr.mxu0 0.0
    %465 = vmatpush1.msra.mxu0 0.0
    %466 = vmatprep.subr.mxu0 0.0
    %467 = vmatpush1.msra.mxu0 0.0
    %468 = vmatprep.subr.mxu0 0.0
    %469 = vmatpush1.msra.mxu0 0.0
    %470 = vmatprep.subr.mxu0 0.0
    %471 = vmatpush1.msra.mxu0 0.0
    %472 = vmatprep.subr.mxu0 0.0
    %473 = vmatpush1.msra.mxu0 0.0
    %474 = vmatprep.subr.mxu0 0.0
    %475 = vmatpush1.msra.mxu0 0.0
    %476 = vmatprep.subr.mxu0 0.0
    %477 = vmatpush1.msra.mxu0 0.0
    %478 = vmatprep.subr.mxu0 0.0
    %479 = vmatpush1.msra.mxu0 0.0
    %480 = vmatprep.subr.mxu0 0.0
    %481 = vmatpush1.msra.mxu0 0.0
    %482 = vmatprep.subr.mxu0 0.0
    %483 = vmatpush1.msra.mxu0 0.0
    %484 = vmatprep.subr.mxu0 0.0
    %485 = vmatpush1.msra.mxu0 0.0
    %486 = vmatprep.subr.mxu0 0.0
    %487 = vmatpush1.msra.mxu0 0.0
    %488 = vmatprep.subr.mxu0 0.0
    %489 = vmatpush1.msra.mxu0 0.0
    %490 = vmatprep.subr.mxu0 0.0
    %491 = vmatpush1.msra.mxu0 0.0
    %492 = vmatprep.subr.mxu0 0.0
    %493 = vmatpush1.msra.mxu0 0.0
    %494 = vmatprep.subr.mxu0 0.0
    %495 = vmatpush1.msra.mxu0 0.0
    %496 = vmatprep.subr.mxu0 0.0
    %497 = vmatpush1.msra.mxu0 0.0
    %498 = vmatprep.subr.mxu0 0.0
    %499 = vmatpush1.msra.mxu0 0.0
    %500 = vmatprep.subr.mxu0 0.0
    %501 = vmatpush1.msra.mxu0 0.0
    %502 = vmatprep.mubr.f32.mxu0 0.0
    %503 = vmatmul.mubr.f32.gmra.mrb[0].mxu0 %v302
    %v504 = vpop.f32.mrb[0].mxu0
    %v505 = vadd.f32 %v263, %v504
    %v506 = vpop.f32.mrb[0].mxu0
    %v507 = vadd.f32 %v263, %v506
    %508 = vmatprep.mubr.f32.mxu0 0.0
    %509 = vmatmul.mubr.f32.gmra.mrb[0].mxu0 %v305
    %v510 = vpop.f32.mrb[0].mxu0
    %v511 = vadd.f32 %v268, %v510
    %v512 = vpop.f32.mrb[0].mxu0
    %v513 = vadd.f32 %v268, %v512
    %514 = vmatprep.mubr.f32.mxu0 0.0
    %515 = vmatmul.mubr.f32.gmra.mrb[0].mxu0 %v308
    %v516 = vpop.f32.mrb[0].mxu0
    %v517 = vadd.f32 %v273, %v516
    %v518 = vpop.f32.mrb[0].mxu0
    %v519 = vadd.f32 %v273, %v518
    %520 = vmatprep.mubr.f32.mxu0 0.0
    %521 = vmatmul.mubr.f32.gmra.mrb[0].mxu0 %v311
    %v522 = vpop.f32.mrb[0].mxu0
    %v523 = vadd.f32 %v278, %v522
    %v524 = vpop.f32.mrb[0].mxu0
    %v525 = vadd.f32 %v278, %v524
    %526 = vmatprep.mubr.f32.mxu0 0.0
    %527 = vmatmul.mubr.f32.gmra.mrb[0].mxu0 %v314
    %v528 = vpop.f32.mrb[0].mxu0
    %v529 = vadd.f32 %v283, %v528
    %v530 = vpop.f32.mrb[0].mxu0
    %v531 = vadd.f32 %v283, %v530
    %532 = vmatprep.mubr.f32.mxu0 0.0
    %533 = vmatmul.mubr.f32.gmra.mrb[0].mxu0 %v317
    %v534 = vpop.f32.mrb[0].mxu0
    %v535 = vadd.f32 %v288, %v534
    %v536 = vpop.f32.mrb[0].mxu0
    %v537 = vadd.f32 %v288, %v536
    %538 = vmatprep.mubr.f32.mxu0 0.0
    %539 = vmatmul.mubr.f32.gmra.mrb[0].mxu0 %v320
    %v540 = vpop.f32.mrb[0].mxu0
    %v541 = vadd.f32 %v293, %v540
    %v542 = vpop.f32.mrb[0].mxu0
    %v543 = vadd.f32 %v293, %v542
    %544 = vmatprep.mubr.f32.mxu0 0.0
    %545 = vmatmul.mubr.f32.gmra.mrb[0].mxu0 %v323
    %v546 = vpop.f32.mrb[0].mxu0
    %v547 = vadd.f32 %v298, %v546
    %v548 = vpop.f32.mrb[0].mxu0
    %v549 = vadd.f32 %v298, %v548
    %550 = vdwg.mxu0
    %v551 = vmax.f32 %v392, 0.0
    %v552 = vmax.f32 %v394, 0.0
    %v553 = vmax.f32 %v505, 0.0
    %v554 = vmax.f32 %v507, 0.0
    %v555 = vmax.f32 %v398, 0.0
    %v556 = vmax.f32 %v400, 0.0
    %v557 = vmax.f32 %v511, 0.0
    %v558 = vmax.f32 %v513, 0.0
    %v559 = vmax.f32 %v404, 0.0
    %v560 = vmax.f32 %v406, 0.0
    %v561 = vmax.f32 %v517, 0.0
    %v562 = vmax.f32 %v519, 0.0
    %v563 = vmax.f32 %v410, 0.0
    %v564 = vmax.f32 %v412, 0.0
    %v565 = vmax.f32 %v523, 0.0
    %v566 = vmax.f32 %v525, 0.0
    %v567 = vmax.f32 %v416, 0.0
    %v568 = vmax.f32 %v418, 0.0
    %v569 = vmax.f32 %v529, 0.0
    %v570 = vmax.f32 %v531, 0.0
    %v571 = vmax.f32 %v422, 0.0
    %v572 = vmax.f32 %v424, 0.0
    %v573 = vmax.f32 %v535, 0.0
    %v574 = vmax.f32 %v537, 0.0
    %v575 = vmax.f32 %v428, 0.0
    %v576 = vmax.f32 %v430, 0.0
    %v577 = vmax.f32 %v541, 0.0
    %v578 = vmax.f32 %v543, 0.0
    %v579 = vmax.f32 %v434, 0.0
    %v580 = vmax.f32 %v436, 0.0
    %v581 = vmax.f32 %v547, 0.0
    %v582 = vmax.f32 %v549, 0.0
    %583 = vst [vmem:[#allocation6] sm:$0xff] %v551
    %vm584 = vcmask 785408
    %585 = vst.msk [vmem:[#allocation6 + $0x8] sm:$0xff] %vm584, %v552
    %586 = vst [vmem:[#allocation6 + $0x10] sm:$0xff] %v555
    %587 = vst.msk [vmem:[#allocation6 + $0x18] sm:$0xff] %vm584, %v556
    %588 = vst [vmem:[#allocation6 + $0x20] sm:$0xff] %v559
    %589 = vst.msk [vmem:[#allocation6 + $0x28] sm:$0xff] %vm584, %v560
    %590 = vst [vmem:[#allocation6 + $0x30] sm:$0xff] %v563
    %591 = vst.msk [vmem:[#allocation6 + $0x38] sm:$0xff] %vm584, %v564
    %592 = vst [vmem:[#allocation6 + $0x40] sm:$0xff] %v567
    %593 = vst.msk [vmem:[#allocation6 + $0x48] sm:$0xff] %vm584, %v568
    %594 = vst [vmem:[#allocation6 + $0x50] sm:$0xff] %v571
    %595 = vst.msk [vmem:[#allocation6 + $0x58] sm:$0xff] %vm584, %v572
    %596 = vst [vmem:[#allocation6 + $0x60] sm:$0xff] %v575
    %597 = vst.msk [vmem:[#allocation6 + $0x68] sm:$0xff] %vm584, %v576
    %598 = vst [vmem:[#allocation6 + $0x70] sm:$0xff] %v579
    %599 = vst.msk [vmem:[#allocation6 + $0x78] sm:$0xff] %vm584, %v580
    %s600 = scalar_lea.vmem [#allocation6], 128
    %601 = vst [vmem:[%s600] sm:$0xff] %v553
    %602 = vst.msk [vmem:[%s600 + $0x8] sm:$0xff] %vm584, %v554
    %603 = vst [vmem:[%s600 + $0x10] sm:$0xff] %v557
    %604 = vst.msk [vmem:[%s600 + $0x18] sm:$0xff] %vm584, %v558
    %605 = vst [vmem:[%s600 + $0x20] sm:$0xff] %v561
    %606 = vst.msk [vmem:[%s600 + $0x28] sm:$0xff] %vm584, %v562
    %607 = vst [vmem:[%s600 + $0x30] sm:$0xff] %v565
    %608 = vst.msk [vmem:[%s600 + $0x38] sm:$0xff] %vm584, %v566
    %609 = vst [vmem:[%s600 + $0x40] sm:$0xff] %v569
    %610 = vst.msk [vmem:[%s600 + $0x48] sm:$0xff] %vm584, %v570
    %611 = vst [vmem:[%s600 + $0x50] sm:$0xff] %v573
    %612 = vst.msk [vmem:[%s600 + $0x58] sm:$0xff] %vm584, %v574
    %613 = vst [vmem:[%s600 + $0x60] sm:$0xff] %v577
    %614 = vst.msk [vmem:[%s600 + $0x68] sm:$0xff] %vm584, %v578
    %615 = vst [vmem:[%s600 + $0x70] sm:$0xff] %v581
    %616 = vst.msk [vmem:[%s600 + $0x78] sm:$0xff] %vm584, %v582
    // Predicated region
    $region18: #{tpu_custom_call.1} parent=1 // pred_check
      _
    $region19: #{tpu_custom_call.1} parent=1 // pred_check_branch
      %618 = sbr.rel (0) target = $region21
    $region20: #{tpu_custom_call.1} parent=1 // pred_region
      %s620 = ssub.s32 4096, 4096
      %621 = vsyncadd [#allocation5], %s620
      %s622 = sshll.u32 [#allocation6], 4
      %s623 = int_to_ptr.vmem [resolvable:$true] %s622
      %628 = dma.vmem_to_hbm [thread:$0]  %s623, 4096, %s3, [#allocation5], 256, 256, 16
    $region21: #{tpu_custom_call.1} parent=1 // pred_fallthru
      _
    // Predicated region
    $region22: #{tpu_custom_call.1} parent=1 // pred_check
      _
    $region23: #{tpu_custom_call.1} parent=1 // pred_check_branch
      %630 = sbr.rel (0) target = $region25
    $region24: #{tpu_custom_call.1} parent=1 // pred_region
      %631 = dma.done [#allocation5], 4096
    $region25: #{tpu_custom_call.1} parent=1 // pred_fallthru
      _
    %632 = vsyncpa [#allocation4], 1
    %633 = vsyncpa [#allocation5], 1

</llo_original>
